<compile_context>
chip_gen: v6e
topology: v6e:2x2x1
jax: 0.10.0
libtpu: 0.0.40
codegen_flags: <defaults>
</compile_context>

<pallas_src>
import functools
import numpy as np
import jax
import jax.numpy as jnp
from jax import lax
from jax.experimental import pallas as pl
from jax.experimental.pallas import tpu as pltpu


# ----------------------------- Pallas kernel -------------------------------

def sk_channel_kernel(im2col_ref, low_ref, wg_ref, bgwc_ref, wsq2_ref,
                      wpwc2_ref, out_ref):
    # im2col_ref: (1, 9*up_ch, HW) bf16 -- 9 shifted copies of the padded "up" half
    # low_ref:    (1, low_ch,   HW) bf16
    # wg_ref:     (C, 9*up_ch)      bf16 -- GWC taps with squeeze1 + PWC1 folded in
    # bgwc_ref:   (C, 1)            f32
    # wsq2_ref:   (sq_low, low_ch)  bf16
    # wpwc2_ref:  (C - sq_low, sq_low) bf16
    # out_ref:    (1, C, HW)        f32
    cols = im2col_ref[0]                     # (9*up_ch, HW)
    low = low_ref[0]                         # (low_ch, HW)

    # ---- up branch: GWC(3x3, groups=2) + PWC1, squeeze1 folded in -> one matmul.
    y1 = jnp.dot(wg_ref[...], cols, preferred_element_type=jnp.float32)
    y1 = y1 + bgwc_ref[...]                  # (C, HW); bias broadcast over lanes

    # ---- low branch: squeeze2 then PWC2; y2 = cat([PWC2(low_sq), low_sq], ch)
    low_sq = jnp.dot(wsq2_ref[...], low, preferred_element_type=jnp.float32)
    pwc2 = jnp.dot(wpwc2_ref[...], low_sq.astype(low.dtype),
                   preferred_element_type=jnp.float32)
    y2 = jnp.concatenate([pwc2, low_sq], axis=0)        # (C, HW), sublane concat

    # ---- channel attention: global avg pool -> softmax over 2C -> scale -> add
    C = y1.shape[0]
    p1 = jnp.mean(y1, axis=1, keepdims=True)            # (C, 1)  lane reduce
    p2 = jnp.mean(y2, axis=1, keepdims=True)            # (C, 1)
    pooled = jnp.concatenate([p1, p2], axis=0)          # (2C, 1)
    m = jnp.max(pooled, axis=0, keepdims=True)          # (1, 1)
    e = jnp.exp(pooled - m)                              # EUP
    tot = jnp.sum(e, axis=0, keepdims=True)             # (1, 1)
    s = e * pl.reciprocal(tot, approx=True)             # (2C, 1) softmax weights

    res = y1 * s[:C] + y2 * s[C:]                       # (C, HW)
    out_ref[0] = res.astype(out_ref.dtype)


# ------------------------------- wrapper ------------------------------------

def attention_block_pallas(x0, x1, kparams):
    """x0: (N, C0, H, W), x1: (N, C1, H, W) float32.  Returns (N, C0+C1, H, W)."""
    N, C0, H, W = x0.shape
    C1 = x1.shape[1]
    C = C0 + C1
    HW = H * W
    up_ch = kparams["up_ch"]
    low_ch = C - up_ch

    # fusion = cat([x0, x1], dim=1); gamma=0.5 makes the "up"/"low" split line up
    # exactly with the x0/x1 boundary, so no concat is materialized.
    if C0 == up_ch:
        up, low = x0, x1
    else:
        fusion = jnp.concatenate([x0, x1], axis=1)
        up, low = fusion[:, :up_ch], fusion[:, up_ch:]

    # im2col of the zero-padded "up" half (layout plumbing in XLA): 9 spatial taps
    # stacked along the channel axis so the grouped 3x3 conv becomes one matmul.
    xp = jnp.pad(up, ((0, 0), (0, 0), (1, 1), (1, 1)))
    cols = [xp[:, :, ky:ky + H, kx:kx + W].reshape(N, up_ch, HW)
            for ky in range(3) for kx in range(3)]
    im2col = jnp.concatenate(cols, axis=1).astype(jnp.bfloat16)   # (N, 9*up_ch, HW)
    low_flat = low.reshape(N, low_ch, HW).astype(jnp.bfloat16)

    w_comb = kparams["w_comb"]        # (C, 9*up_ch) bf16
    b_gwc = kparams["b_gwc"]          # (C, 1)       f32
    w_sq2 = kparams["w_sq2"]          # (sq_low, low_ch) bf16
    w_pwc2 = kparams["w_pwc2"]        # (C - sq_low, sq_low) bf16
    sq_low = w_sq2.shape[0]

    out_flat = pl.pallas_call(
        sk_channel_kernel,
        out_shape=jax.ShapeDtypeStruct((N, C, HW), jnp.float32),
        grid=(N,),
        in_specs=[
            pl.BlockSpec((1, 9 * up_ch, HW), lambda n: (n, 0, 0)),
            pl.BlockSpec((1, low_ch, HW), lambda n: (n, 0, 0)),
            pl.BlockSpec((C, 9 * up_ch), lambda n: (0, 0)),
            pl.BlockSpec((C, 1), lambda n: (0, 0)),
            pl.BlockSpec((sq_low, low_ch), lambda n: (0, 0)),
            pl.BlockSpec((C - sq_low, sq_low), lambda n: (0, 0)),
        ],
        out_specs=pl.BlockSpec((1, C, HW), lambda n: (n, 0, 0)),
        compiler_params=pltpu.CompilerParams(
            dimension_semantics=("parallel",)),
    )(im2col, low_flat, w_comb, b_gwc, w_sq2, w_pwc2)

    return out_flat.reshape(N, C, H, W)


# ------------------------- parameter construction ---------------------------

def make_params(key, op_channel, gamma=0.5, squeeze_radio=2, group_size=2):
    C = op_channel
    up_ch = int(gamma * C)
    low_ch = C - up_ch
    sq_up = up_ch // squeeze_radio
    sq_low = low_ch // squeeze_radio
    icpg = sq_up // group_size               # in-channels per group for GWC
    oc_per_g = C // group_size

    k = jax.random.split(key, 6)
    # PyTorch-layout weights (Cout, Cin[, kh, kw]).
    w_sq1 = jax.random.normal(k[0], (sq_up, up_ch), jnp.float32) * np.sqrt(2.0 / up_ch)
    w_sq2 = jax.random.normal(k[1], (sq_low, low_ch), jnp.float32) * np.sqrt(2.0 / low_ch)
    w_pwc1 = jax.random.normal(k[2], (C, sq_up), jnp.float32) * np.sqrt(2.0 / sq_up)
    w_pwc2 = jax.random.normal(k[3], (C - sq_low, sq_low), jnp.float32) * np.sqrt(2.0 / sq_low)
    w_gwc = jax.random.normal(k[4], (C, icpg, 3, 3), jnp.float32) * np.sqrt(2.0 / (icpg * 9))
    b_gwc = jax.random.normal(k[5], (C,), jnp.float32) * 0.1

    # Fold squeeze1 (1x1, no bias) and PWC1 (centre tap) into the grouped 3x3
    # weight, expressed in im2col layout (C, 9*up_ch):
    #   y1[oc, p] = b[oc] + sum_{tap, j} w_comb[oc, tap*up_ch + j] * up_pad[j, p@tap]
    w_sq1_np = np.asarray(w_sq1, np.float64)
    w_gwc_np = np.asarray(w_gwc, np.float64)
    w_pwc1_np = np.asarray(w_pwc1, np.float64)
    w_comb = np.zeros((C, 9 * up_ch), np.float64)
    for oc in range(C):
        g = oc // oc_per_g
        for ky in range(3):
            for kx in range(3):
                tap = ky * 3 + kx
                blk = np.zeros((up_ch,), np.float64)
                for ic in range(icpg):                      # grouped 3x3 conv
                    blk += w_gwc_np[oc, ic, ky, kx] * w_sq1_np[g * icpg + ic, :]
                if tap == 4:                                # centre tap: fold PWC1
                    for d in range(sq_up):
                        blk += w_pwc1_np[oc, d] * w_sq1_np[d, :]
                w_comb[oc, tap * up_ch:(tap + 1) * up_ch] = blk

    kparams = dict(
        w_comb=jnp.asarray(w_comb, jnp.float32).astype(jnp.bfloat16),
        b_gwc=b_gwc.reshape(C, 1),
        w_sq2=w_sq2.astype(jnp.bfloat16),
        w_pwc2=w_pwc2.astype(jnp.bfloat16),
        up_ch=up_ch,
    )
    torch_params = dict(w_sq1=w_sq1, w_sq2=w_sq2, w_gwc=w_gwc, b_gwc=b_gwc,
                        w_pwc1=w_pwc1, w_pwc2=w_pwc2, up_ch=up_ch,
                        groups=group_size)
    return kparams, torch_params


# ------------------------ pure-JAX reference (check) ------------------------

def attention_block_ref(x0, x1, tp):
    fusion = jnp.concatenate([x0, x1], axis=1)                 # (N, C, H, W)
    C = fusion.shape[1]
    up_ch = tp["up_ch"]
    up, low = fusion[:, :up_ch], fusion[:, up_ch:]

    hp = functools.partial(jnp.einsum, precision=lax.Precision.HIGHEST)
    up_s = hp('nchw,dc->ndhw', up, tp["w_sq1"])
    low_s = hp('nchw,dc->ndhw', low, tp["w_sq2"])

    gwc = lax.conv_general_dilated(
        up_s, tp["w_gwc"], (1, 1), 'SAME',
        dimension_numbers=('NCHW', 'OIHW', 'NCHW'),
        feature_group_count=tp["groups"],
        precision=lax.Precision.HIGHEST) + tp["b_gwc"][None, :, None, None]
    y1 = gwc + hp('ndhw,ed->nehw', up_s, tp["w_pwc1"])
    y2 = jnp.concatenate([hp('ndhw,ed->nehw', low_s, tp["w_pwc2"]), low_s], axis=1)

    out = jnp.concatenate([y1, y2], axis=1)                    # (N, 2C, H, W)
    pooled = jnp.mean(out, axis=(2, 3), keepdims=True)
    s = jax.nn.softmax(pooled, axis=1)
    out = out * s
    return out[:, :C] + out[:, C:]


# --------------------------------- main --------------------------------------

if __name__ == "__main__":
    # Small shapes: batch=2, x0/x1 each 8 channels (fused C=16), spatial 16x16.
    N, C0, C1, H, W = 2, 8, 8, 16, 16
    key = jax.random.PRNGKey(0)
    k0, k1, kp = jax.random.split(key, 3)
    x0 = jax.random.normal(k0, (N, C0, H, W), jnp.float32)
    x1 = jax.random.normal(k1, (N, C1, H, W), jnp.float32)

    kparams, torch_params = make_params(kp, op_channel=C0 + C1)

    out = jax.block_until_ready(attention_block_pallas(x0, x1, kparams))
    ref = jax.block_until_ready(attention_block_ref(x0, x1, torch_params))

    assert out.shape == (N, C0 + C1, H, W)
    assert bool(jnp.allclose(out, ref, rtol=2e-2, atol=2e-2)), (
        f"max abs err = {float(jnp.max(jnp.abs(out - ref)))}")

    print("KERNEL_OK")
</pallas_src>

<mosaic_0001>
module attributes {stable_mosaic.version = 11 : i64} {
  func.func @sk_channel_kernel(%arg0: i32, %arg1: memref<1x72x256xbf16, #tpu.memory_space<vmem>>, %arg2: memref<1x8x256xbf16, #tpu.memory_space<vmem>>, %arg3: memref<16x72xbf16, #tpu.memory_space<vmem>>, %arg4: memref<16x1xf32, #tpu.memory_space<vmem>>, %arg5: memref<4x8xbf16, #tpu.memory_space<vmem>>, %arg6: memref<12x4xbf16, #tpu.memory_space<vmem>>, %arg7: memref<1x16x256xf32, #tpu.memory_space<vmem>>) attributes {dimension_semantics = [#tpu.dimension_semantics<parallel>], iteration_bounds = array<i64: 2>, scalar_prefetch = 0 : i64, scratch_operands = 0 : i64, tpu.core_type = #tpu.core_type<tc>, window_params = [{transform_indices = @transform_0, window_bounds = array<i64: 1, 72, 256>}, {transform_indices = @transform_1, window_bounds = array<i64: 1, 8, 256>}, {pipeline_mode = #tpu.pipeline_mode<synchronous>, transform_indices = @transform_2, window_bounds = array<i64: 16, 72>}, {pipeline_mode = #tpu.pipeline_mode<synchronous>, transform_indices = @transform_3, window_bounds = array<i64: 16, 1>}, {pipeline_mode = #tpu.pipeline_mode<synchronous>, transform_indices = @transform_4, window_bounds = array<i64: 4, 8>}, {pipeline_mode = #tpu.pipeline_mode<synchronous>, transform_indices = @transform_5, window_bounds = array<i64: 12, 4>}, {transform_indices = @transform_6, window_bounds = array<i64: 1, 16, 256>}]} {
    %c0 = arith.constant 0 : index
    %c0_0 = arith.constant 0 : index
    %c0_1 = arith.constant 0 : index
    %0 = vector.load %arg1[%c0, %c0_0, %c0_1] : memref<1x72x256xbf16, #tpu.memory_space<vmem>>, vector<1x72x256xbf16>
    %1 = vector.shape_cast %0 : vector<1x72x256xbf16> to vector<72x256xbf16>
    %c0_2 = arith.constant 0 : index
    %c0_3 = arith.constant 0 : index
    %c0_4 = arith.constant 0 : index
    %2 = vector.load %arg2[%c0_2, %c0_3, %c0_4] : memref<1x8x256xbf16, #tpu.memory_space<vmem>>, vector<1x8x256xbf16>
    %3 = vector.shape_cast %2 : vector<1x8x256xbf16> to vector<8x256xbf16>
    %c0_5 = arith.constant 0 : index
    %c0_6 = arith.constant 0 : index
    %4 = vector.load %arg3[%c0_5, %c0_6] : memref<16x72xbf16, #tpu.memory_space<vmem>>, vector<16x72xbf16>
    %cst = arith.constant dense<0.000000e+00> : vector<16x256xf32>
    %5 = tpu.matmul %4, %1, %cst {dimension_numbers = #tpu.dot_dimension_numbers<[1], [0], [0], [1], [0, 0, 1, 1], [], []>} : vector<16x72xbf16>, vector<72x256xbf16>, vector<16x256xf32> -> vector<16x256xf32>
    %c0_7 = arith.constant 0 : index
    %c0_8 = arith.constant 0 : index
    %6 = vector.load %arg4[%c0_7, %c0_8] : memref<16x1xf32, #tpu.memory_space<vmem>>, vector<16x1xf32>
    %7 = vector.broadcast %6 : vector<16x1xf32> to vector<16x256xf32>
    %8 = arith.addf %5, %7 : vector<16x256xf32>
    %c0_9 = arith.constant 0 : index
    %c0_10 = arith.constant 0 : index
    %9 = vector.load %arg5[%c0_9, %c0_10] : memref<4x8xbf16, #tpu.memory_space<vmem>>, vector<4x8xbf16>
    %cst_11 = arith.constant dense<0.000000e+00> : vector<4x256xf32>
    %10 = tpu.matmul %9, %3, %cst_11 {dimension_numbers = #tpu.dot_dimension_numbers<[1], [0], [0], [1], [0, 0, 1, 1], [], []>} : vector<4x8xbf16>, vector<8x256xbf16>, vector<4x256xf32> -> vector<4x256xf32>
    %c0_12 = arith.constant 0 : index
    %c0_13 = arith.constant 0 : index
    %11 = vector.load %arg6[%c0_12, %c0_13] : memref<12x4xbf16, #tpu.memory_space<vmem>>, vector<12x4xbf16>
    %12 = arith.truncf %10 : vector<4x256xf32> to vector<4x256xbf16>
    %cst_14 = arith.constant dense<0.000000e+00> : vector<12x256xf32>
    %13 = tpu.matmul %11, %12, %cst_14 {dimension_numbers = #tpu.dot_dimension_numbers<[1], [0], [0], [1], [0, 0, 1, 1], [], []>} : vector<12x4xbf16>, vector<4x256xbf16>, vector<12x256xf32> -> vector<12x256xf32>
    %14 = tpu.concatenate %13, %10 in 0 : vector<12x256xf32>, vector<4x256xf32> -> vector<16x256xf32>
    %cst_15 = arith.constant dense<0.000000e+00> : vector<16xf32>
    %15 = vector.multi_reduction <add>, %8, %cst_15 [1] : vector<16x256xf32> to vector<16xf32>
    %16 = vector.shape_cast %15 : vector<16xf32> to vector<16x1xf32>
    %cst_16 = arith.constant 2.560000e+02 : f32
    %17 = vector.broadcast %cst_16 : f32 to vector<16x1xf32>
    %18 = arith.divf %16, %17 : vector<16x1xf32>
    %cst_17 = arith.constant dense<0.000000e+00> : vector<16xf32>
    %19 = vector.multi_reduction <add>, %14, %cst_17 [1] : vector<16x256xf32> to vector<16xf32>
    %20 = vector.shape_cast %19 : vector<16xf32> to vector<16x1xf32>
    %cst_18 = arith.constant 2.560000e+02 : f32
    %21 = vector.broadcast %cst_18 : f32 to vector<16x1xf32>
    %22 = arith.divf %20, %21 : vector<16x1xf32>
    %23 = tpu.concatenate %18, %22 in 0 : vector<16x1xf32>, vector<16x1xf32> -> vector<32x1xf32>
    %cst_19 = arith.constant dense<0xFF800000> : vector<1xf32>
    %24 = vector.multi_reduction <maximumf>, %23, %cst_19 [0] : vector<32x1xf32> to vector<1xf32>
    %25 = vector.shape_cast %24 : vector<1xf32> to vector<1x1xf32>
    %26 = vector.broadcast %25 : vector<1x1xf32> to vector<32x1xf32>
    %27 = arith.subf %23, %26 : vector<32x1xf32>
    %28 = math.exp %27 : vector<32x1xf32>
    %cst_20 = arith.constant dense<0.000000e+00> : vector<1xf32>
    %29 = vector.multi_reduction <add>, %28, %cst_20 [0] : vector<32x1xf32> to vector<1xf32>
    %30 = vector.shape_cast %29 : vector<1xf32> to vector<1x1xf32>
    %31 = tpu.reciprocal %30 {approx = true} : vector<1x1xf32> -> vector<1x1xf32>
    %32 = vector.broadcast %31 : vector<1x1xf32> to vector<32x1xf32>
    %33 = arith.mulf %28, %32 : vector<32x1xf32>
    %34 = vector.extract_strided_slice %33 {offsets = [0, 0], sizes = [16, 1], strides = [1, 1]} : vector<32x1xf32> to vector<16x1xf32>
    %35 = vector.broadcast %34 : vector<16x1xf32> to vector<16x256xf32>
    %36 = arith.mulf %8, %35 : vector<16x256xf32>
    %37 = vector.extract_strided_slice %33 {offsets = [16, 0], sizes = [16, 1], strides = [1, 1]} : vector<32x1xf32> to vector<16x1xf32>
    %38 = vector.broadcast %37 : vector<16x1xf32> to vector<16x256xf32>
    %39 = arith.mulf %14, %38 : vector<16x256xf32>
    %40 = arith.addf %36, %39 : vector<16x256xf32>
    %c0_21 = arith.constant 0 : index
    %c0_22 = arith.constant 0 : index
    %c0_23 = arith.constant 0 : index
    %41 = vector.load %arg7[%c0_21, %c0_22, %c0_23] : memref<1x16x256xf32, #tpu.memory_space<vmem>>, vector<1x16x256xf32>
    %42 = vector.shape_cast %41 : vector<1x16x256xf32> to vector<16x256xf32>
    %43 = vector.shape_cast %40 : vector<16x256xf32> to vector<1x16x256xf32>
    tpu.vector_store %arg7[%c0_21, %c0_22, %c0_23], %43 {strides = array<i32>} : memref<1x16x256xf32, #tpu.memory_space<vmem>>, vector<1x16x256xf32>,
    return
  }
  func.func @transform_0(%arg0: i32) -> (i32, i32, i32) {
    %c0_i32 = arith.constant 0 : i32
    %c0_i32_0 = arith.constant 0 : i32
    %c0_i32_1 = arith.constant 0 : i32
    return %arg0, %c0_i32, %c0_i32_0 : i32, i32, i32
  }
  func.func @transform_1(%arg0: i32) -> (i32, i32, i32) {
    %c0_i32 = arith.constant 0 : i32
    %c0_i32_0 = arith.constant 0 : i32
    %c0_i32_1 = arith.constant 0 : i32
    return %arg0, %c0_i32, %c0_i32_0 : i32, i32, i32
  }
  func.func @transform_2(%arg0: i32) -> (i32, i32) {
    %c0_i32 = arith.constant 0 : i32
    %c0_i32_0 = arith.constant 0 : i32
    %c0_i32_1 = arith.constant 0 : i32
    return %c0_i32, %c0_i32_0 : i32, i32
  }
  func.func @transform_3(%arg0: i32) -> (i32, i32) {
    %c0_i32 = arith.constant 0 : i32
    %c0_i32_0 = arith.constant 0 : i32
    %c0_i32_1 = arith.constant 0 : i32
    return %c0_i32, %c0_i32_0 : i32, i32
  }
  func.func @transform_4(%arg0: i32) -> (i32, i32) {
    %c0_i32 = arith.constant 0 : i32
    %c0_i32_0 = arith.constant 0 : i32
    %c0_i32_1 = arith.constant 0 : i32
    return %c0_i32, %c0_i32_0 : i32, i32
  }
  func.func @transform_5(%arg0: i32) -> (i32, i32) {
    %c0_i32 = arith.constant 0 : i32
    %c0_i32_0 = arith.constant 0 : i32
    %c0_i32_1 = arith.constant 0 : i32
    return %c0_i32, %c0_i32_0 : i32, i32
  }
  func.func @transform_6(%arg0: i32) -> (i32, i32, i32) {
    %c0_i32 = arith.constant 0 : i32
    %c0_i32_0 = arith.constant 0 : i32
    %c0_i32_1 = arith.constant 0 : i32
    return %arg0, %c0_i32, %c0_i32_0 : i32, i32, i32
  }
}

</mosaic_0001>

<llo_original>
// kernel: tpu_custom_call.1
$region0: #{tpu_custom_call.1}
  #allocation0 [shape = 'u32[]', space=smem, size = 0x4, offset = 0x4, fixed_abs, tag = 'smem constant byte address 0x4 - core index']
  #allocation1 [shape = 'u32[144,128]{1,0:T(1,128)}', space=vmem, size = 0x12000, scoped, tag = 'internal scratch']
  %s0 = inlined_call_operand.hbm [shape: bf16[2,72,256], index: 0, kind: input, shape index: {}]
  %s1 = inlined_call_operand.vmem [shape: bf16[2,8,256], index: 1, kind: input, shape index: {}]
  %s2 = inlined_call_operand.vmem [shape: bf16[16,72], index: 2, kind: input, shape index: {}]
  %s3 = inlined_call_operand.vmem [shape: f32[16,1], index: 3, kind: input, shape index: {}]
  %s4 = inlined_call_operand.vmem [shape: bf16[4,8], index: 4, kind: input, shape index: {}]
  %s5 = inlined_call_operand.vmem [shape: bf16[12,4], index: 5, kind: input, shape index: {}]
  %s6 = inlined_call_operand.hbm [shape: f32[2,16,256], index: 6, kind: output, shape index: {}]
  %s7 = sld [smem:[#allocation0]]
  $region61: #{tpu_custom_call.1} parent=0
    _
  %s9 = ssub.s32 1, %s7
  %s10 = scalar_select 0, %s9, %s7
  $region1: #{tpu_custom_call.1} parent=0
    #allocation2 [shape = 'u8[73728]{0}', space=vmem, size = 0x12000, scoped, tag = 'input window, operand 0']
    #allocation3 [shape = 's32[2]{0}', space=sflag, size = 0x8, scoped, tag = 'scoped memory for tpu_custom_call.1']
    #allocation4 [shape = 's32[2]{0}', space=sflag, size = 0x8, scoped, tag = 'scoped memory for tpu_custom_call.1']
    #allocation5 [shape = 'u8[32768]{0}', space=vmem, size = 0x8000, scoped, tag = 'output window, operand 0']
    %11 = vsyncpa [#allocation3], 0
    %s12 = scalar_lea.sflag [#allocation3], 1
    %13 = vsyncpa %s12, 0
    %14 = vsyncpa [#allocation4], 0
    %s15 = scalar_lea.sflag [#allocation4], 1
    %16 = vsyncpa %s15, 0
    loop: start=0, step=1, limit=4
    $region2: #{tpu_custom_call.1} parent=1 // loop_pre_header
      _
    $region3: #{tpu_custom_call.1} parent=1 // loop_header
      %s18 = sphi 0, %s22
      %p19 = scmp.ge.s32.totalorder %s18, 4
      %s28 = sphi 0, %s30
      %s31 = sphi 0, %s28
      %s32 = sphi 0, %s31
      %s48 = sphi 0, %s32
      %s54 = sphi 0, %s56
      %s57 = sphi 0, %s54
      %s58 = sphi 0, %s57
      %s74 = sphi 0, %s58
      %s78 = sphi 0, %s78
      %s80 = sphi 0, %s78
      %s81 = sphi 0, %s80
      %s95 = sphi 0, %s81
      %s99 = sphi 0, %s99
      %s101 = sphi 0, %s99
      %s102 = sphi 0, %s101
      %s116 = sphi 0, %s102
      %s120 = sphi 0, %s120
      %s122 = sphi 0, %s120
      %s123 = sphi 0, %s122
      %s137 = sphi 0, %s123
      %s141 = sphi 0, %s141
      %s143 = sphi 0, %s141
      %s144 = sphi 0, %s143
      %s158 = sphi 0, %s144
      %s164 = sphi 0, %s166
      %s167 = sphi 0, %s164
      %s168 = sphi 0, %s167
      %s184 = sphi 0, %s168
    $region4: #{tpu_custom_call.1} parent=1 // loop_header_branch
      %21 = sbr.rel (%p19) target = $region8
    $region5: #{tpu_custom_call.1} parent=1 // loop_body
      %s23 = ssub.s32 %s18, 1
      %s24 = ssub.s32 %s18, 2
      %s25 = sadd.s32 %s18, 1
      %s26 = ssub.s32 %s18, %s25
      %p27 = scmp.eq.s32.totalorder %s26, 0
      %s29 = sadd.s32 %s28, 1
      %s30 = scalar_select %p27, %s28, %s29
      %p33 = pneg %p27
      %p34 = scmp.eq.s32.totalorder %s18, 1
      %p35 = por %p33, %p34
      %p36 = scmp.ne.s32.totalorder %s28, %s31
      %p37 = scmp.eq.s32.totalorder %s18, 0
      %p38 = por %p36, %p37
      %p39 = scmp.ne.s32.totalorder %s28, %s31
      %p40 = scmp.eq.s32.totalorder %s23, 1
      %p41 = por %p39, %p40
      %p42 = scmp.ne.s32.totalorder %s31, %s32
      %p43 = scmp.eq.s32.totalorder %s23, 0
      %p44 = por %p42, %p43
      %p45 = scmp.ne.s32.totalorder %s31, %s32
      %p46 = scmp.eq.s32.totalorder %s24, 1
      %p47 = por %p45, %p46
      %p49 = scmp.ne.s32.totalorder %s32, %s48
      %p50 = scmp.eq.s32.totalorder %s24, 0
      %p51 = por %p49, %p50
      %s52 = ssub.s32 %s18, %s25
      %p53 = scmp.eq.s32.totalorder %s52, 0
      %s55 = sadd.s32 %s54, 1
      %s56 = scalar_select %p53, %s54, %s55
      %p59 = pneg %p53
      %p60 = scmp.eq.s32.totalorder %s18, 1
      %p61 = por %p59, %p60
      %p62 = scmp.ne.s32.totalorder %s54, %s57
      %p63 = scmp.eq.s32.totalorder %s18, 0
      %p64 = por %p62, %p63
      %p65 = scmp.ne.s32.totalorder %s54, %s57
      %p66 = scmp.eq.s32.totalorder %s23, 1
      %p67 = por %p65, %p66
      %p68 = scmp.ne.s32.totalorder %s57, %s58
      %p69 = scmp.eq.s32.totalorder %s23, 0
      %p70 = por %p68, %p69
      %p71 = scmp.ne.s32.totalorder %s57, %s58
      %p72 = scmp.eq.s32.totalorder %s24, 1
      %p73 = por %p71, %p72
      %p75 = scmp.ne.s32.totalorder %s58, %s74
      %p76 = scmp.eq.s32.totalorder %s24, 0
      %p77 = por %p75, %p76
      %s79 = sadd.s32 %s78, 1
      %p82 = scmp.eq.s32.totalorder %s18, 1
      %p83 = scmp.ne.s32.totalorder %s78, %s80
      %p84 = scmp.eq.s32.totalorder %s18, 0
      %p85 = por %p83, %p84
      %p86 = scmp.ne.s32.totalorder %s78, %s80
      %p87 = scmp.eq.s32.totalorder %s23, 1
      %p88 = por %p86, %p87
      %p89 = scmp.ne.s32.totalorder %s80, %s81
      %p90 = scmp.eq.s32.totalorder %s23, 0
      %p91 = por %p89, %p90
      %p92 = scmp.ne.s32.totalorder %s80, %s81
      %p93 = scmp.eq.s32.totalorder %s24, 1
      %p94 = por %p92, %p93
      %p96 = scmp.ne.s32.totalorder %s81, %s95
      %p97 = scmp.eq.s32.totalorder %s24, 0
      %p98 = por %p96, %p97
      %s100 = sadd.s32 %s99, 1
      %p103 = scmp.eq.s32.totalorder %s18, 1
      %p104 = scmp.ne.s32.totalorder %s99, %s101
      %p105 = scmp.eq.s32.totalorder %s18, 0
      %p106 = por %p104, %p105
      %p107 = scmp.ne.s32.totalorder %s99, %s101
      %p108 = scmp.eq.s32.totalorder %s23, 1
      %p109 = por %p107, %p108
      %p110 = scmp.ne.s32.totalorder %s101, %s102
      %p111 = scmp.eq.s32.totalorder %s23, 0
      %p112 = por %p110, %p111
      %p113 = scmp.ne.s32.totalorder %s101, %s102
      %p114 = scmp.eq.s32.totalorder %s24, 1
      %p115 = por %p113, %p114
      %p117 = scmp.ne.s32.totalorder %s102, %s116
      %p118 = scmp.eq.s32.totalorder %s24, 0
      %p119 = por %p117, %p118
      %s121 = sadd.s32 %s120, 1
      %p124 = scmp.eq.s32.totalorder %s18, 1
      %p125 = scmp.ne.s32.totalorder %s120, %s122
      %p126 = scmp.eq.s32.totalorder %s18, 0
      %p127 = por %p125, %p126
      %p128 = scmp.ne.s32.totalorder %s120, %s122
      %p129 = scmp.eq.s32.totalorder %s23, 1
      %p130 = por %p128, %p129
      %p131 = scmp.ne.s32.totalorder %s122, %s123
      %p132 = scmp.eq.s32.totalorder %s23, 0
      %p133 = por %p131, %p132
      %p134 = scmp.ne.s32.totalorder %s122, %s123
      %p135 = scmp.eq.s32.totalorder %s24, 1
      %p136 = por %p134, %p135
      %p138 = scmp.ne.s32.totalorder %s123, %s137
      %p139 = scmp.eq.s32.totalorder %s24, 0
      %p140 = por %p138, %p139
      %s142 = sadd.s32 %s141, 1
      %p145 = scmp.eq.s32.totalorder %s18, 1
      %p146 = scmp.ne.s32.totalorder %s141, %s143
      %p147 = scmp.eq.s32.totalorder %s18, 0
      %p148 = por %p146, %p147
      %p149 = scmp.ne.s32.totalorder %s141, %s143
      %p150 = scmp.eq.s32.totalorder %s23, 1
      %p151 = por %p149, %p150
      %p152 = scmp.ne.s32.totalorder %s143, %s144
      %p153 = scmp.eq.s32.totalorder %s23, 0
      %p154 = por %p152, %p153
      %p155 = scmp.ne.s32.totalorder %s143, %s144
      %p156 = scmp.eq.s32.totalorder %s24, 1
      %p157 = por %p155, %p156
      %p159 = scmp.ne.s32.totalorder %s144, %s158
      %p160 = scmp.eq.s32.totalorder %s24, 0
      %p161 = por %p159, %p160
      %s162 = ssub.s32 %s18, %s25
      %p163 = scmp.eq.s32.totalorder %s162, 0
      %s165 = sadd.s32 %s164, 1
      %s166 = scalar_select %p163, %s164, %s165
      %p169 = pneg %p163
      %p170 = scmp.eq.s32.totalorder %s18, 1
      %p171 = por %p169, %p170
      %p172 = scmp.ne.s32.totalorder %s164, %s167
      %p173 = scmp.eq.s32.totalorder %s18, 0
      %p174 = por %p172, %p173
      %p175 = scmp.ne.s32.totalorder %s164, %s167
      %p176 = scmp.eq.s32.totalorder %s23, 1
      %p177 = por %p175, %p176
      %p178 = scmp.ne.s32.totalorder %s167, %s168
      %p179 = scmp.eq.s32.totalorder %s23, 0
      %p180 = por %p178, %p179
      %p181 = scmp.ne.s32.totalorder %s167, %s168
      %p182 = scmp.eq.s32.totalorder %s24, 1
      %p183 = por %p181, %p182
      %p185 = scmp.ne.s32.totalorder %s168, %s184
      %p186 = scmp.eq.s32.totalorder %s24, 0
      %p187 = por %p185, %p186
      %p188 = scmp.le.s32.totalorder 1, %s18
      %p189 = scmp.lt.s32.totalorder %s18, 3
      %p190 = pnand %p188, %p189
      %p191 = pneg %p190
      // Predicated region
      $region9: #{tpu_custom_call.1} parent=5 // pred_check
        _
      $region10: #{tpu_custom_call.1} parent=5 // pred_check_branch
        %193 = sbr.rel (%p190) target = $region12
      $region11: #{tpu_custom_call.1} parent=5 // pred_region
        %s194 = ssub.s32 %s18, 1
        // Predicated region
        $region13: #{tpu_custom_call.1} parent=11 // pred_check
          %p195 = pneg %p91
        $region14: #{tpu_custom_call.1} parent=11 // pred_check_branch
          %197 = sbr.rel (%p195) target = $region16
        $region15: #{tpu_custom_call.1} parent=11 // pred_region
          _
        $region16: #{tpu_custom_call.1} parent=11 // pred_fallthru
          _
        // Predicated region
        $region17: #{tpu_custom_call.1} parent=11 // pred_check
          %p198 = pneg %p112
        $region18: #{tpu_custom_call.1} parent=11 // pred_check_branch
          %200 = sbr.rel (%p198) target = $region20
        $region19: #{tpu_custom_call.1} parent=11 // pred_region
          _
        $region20: #{tpu_custom_call.1} parent=11 // pred_fallthru
          _
        // Predicated region
        $region21: #{tpu_custom_call.1} parent=11 // pred_check
          %p201 = pneg %p133
        $region22: #{tpu_custom_call.1} parent=11 // pred_check_branch
          %203 = sbr.rel (%p201) target = $region24
        $region23: #{tpu_custom_call.1} parent=11 // pred_region
          _
        $region24: #{tpu_custom_call.1} parent=11 // pred_fallthru
          _
        // Predicated region
        $region25: #{tpu_custom_call.1} parent=11 // pred_check
          %p204 = pneg %p154
        $region26: #{tpu_custom_call.1} parent=11 // pred_check_branch
          %206 = sbr.rel (%p204) target = $region28
        $region27: #{tpu_custom_call.1} parent=11 // pred_region
          _
        $region28: #{tpu_custom_call.1} parent=11 // pred_fallthru
          _
      $region12: #{tpu_custom_call.1} parent=5 // pred_fallthru
        _
      %p207 = scmp.lt.s32.totalorder %s18, 2
      // Predicated region
      $region29: #{tpu_custom_call.1} parent=5 // pred_check
        %p208 = pneg %p207
      $region30: #{tpu_custom_call.1} parent=5 // pred_check_branch
        %210 = sbr.rel (%p208) target = $region32
      $region31: #{tpu_custom_call.1} parent=5 // pred_region
        // Predicated region
        $region33: #{tpu_custom_call.1} parent=31 // pred_check
          %p211 = pneg %p38
        $region34: #{tpu_custom_call.1} parent=31 // pred_check_branch
          %213 = sbr.rel (%p211) target = $region36
        $region35: #{tpu_custom_call.1} parent=31 // pred_region
          %s214 = sand.u32 %s28, 1
          %s215 = scalar_lea.sflag [#allocation3], %s214
          %s216 = sand.u32 %s28, 1
          %s217 = smul.addr %s216, 72
          %s218 = scalar_lea.vmem [#allocation2], %s217
          %s220 = ssub.s32 1152, 1152
          %221 = vsyncadd %s215, %s220
          %s222 = smul.addr %s18, 18
          %s223 = smul.addr %s222, 64
          %s224 = scalar_lea.hbm %s0, %s223
          %s225 = sshll.u32 %s218, 4
          %s226 = int_to_ptr.vmem [resolvable:$true] %s225
          %231 = dma.hbm_to_vmem [thread:$0]  %s224, 1152, %s226, %s215, 128, 128, 8
        $region36: #{tpu_custom_call.1} parent=31 // pred_fallthru
          _
        // Predicated region
        $region37: #{tpu_custom_call.1} parent=31 // pred_check
          %p232 = pneg %p64
        $region38: #{tpu_custom_call.1} parent=31 // pred_check_branch
          %234 = sbr.rel (%p232) target = $region40
        $region39: #{tpu_custom_call.1} parent=31 // pred_region
          %p235 = scmp.lt.s32.totalorder %s18, 1
          %s236 = scalar_select %p235, %s18, 1
          %s237 = smul.addr %s236, 2
          %s238 = smul.addr %s237, 4
          %s239 = scalar_lea.vmem %s1, %s238
        $region40: #{tpu_custom_call.1} parent=31 // pred_fallthru
          _
      $region32: #{tpu_custom_call.1} parent=5 // pred_fallthru
        _
      %p240 = scmp.le.s32.totalorder 1, %s18
      %p241 = scmp.lt.s32.totalorder %s18, 3
      %p242 = pnand %p240, %p241
      %p243 = pneg %p242
      // Predicated region
      $region41: #{tpu_custom_call.1} parent=5 // pred_check
        _
      $region42: #{tpu_custom_call.1} parent=5 // pred_check_branch
        %245 = sbr.rel (%p242) target = $region44
      $region43: #{tpu_custom_call.1} parent=5 // pred_region
        %s246 = ssub.s32 %s18, 1
        %s247 = sand.u32 %s31, 1
        %s248 = scalar_lea.sflag [#allocation3], %s247
        %s249 = sand.u32 %s31, 1
        %s250 = smul.addr %s249, 72
        %s251 = scalar_lea.vmem [#allocation2], %s250
        // Predicated region
        $region45: #{tpu_custom_call.1} parent=43 // pred_check
          %p252 = pneg %p44
        $region46: #{tpu_custom_call.1} parent=43 // pred_check_branch
          %254 = sbr.rel (%p252) target = $region48
        $region47: #{tpu_custom_call.1} parent=43 // pred_region
          %255 = dma.done %s248, 1152
        $region48: #{tpu_custom_call.1} parent=43 // pred_fallthru
          _
        %s256 = sand.u32 %s31, 1
        %s257 = scalar_lea.sflag [#allocation3], %s256
        %s258 = sand.u32 %s31, 1
        %s259 = smul.addr %s258, 72
        %s260 = scalar_lea.vmem [#allocation2], %s259
        %p261 = pneg %p44
        %p262 = pneg %p41
        %p263 = scmp.lt.s32.totalorder %s23, 1
        %s264 = scalar_select %p263, %s23, 1
        %s265 = smul.addr %s264, 2
        %s266 = smul.addr %s265, 4
        %s267 = scalar_lea.vmem %s1, %s266
        %p268 = pneg %p70
        %p269 = pneg %p67
        %p270 = pneg %p91
        %p271 = pneg %p88
        %p272 = pneg %p112
        %p273 = pneg %p109
        %p274 = pneg %p133
        %p275 = pneg %p130
        %p276 = pneg %p154
        %p277 = pneg %p151
        %p278 = pneg %p180
        %p279 = pneg %p177
        %s280 = sand.u32 %s167, 1
        %s281 = scalar_lea.sflag [#allocation4], %s280
        %s282 = sand.u32 %s167, 1
        %s283 = smul.addr %s282, 32
        %s284 = scalar_lea.vmem [#allocation5], %s283
        %p285 = scmp.lt.s32.totalorder %s23, 1
        %s286 = scalar_select %p285, %s23, 1
        %s287 = smul.addr %s286, 2
        %s288 = smul.addr %s287, 4
        %s289 = scalar_lea.vmem %s1, %s288
        %v291 = vld [vmem:[%s251] sm:$0xff]
        %v292 = vld [vmem:[%s251 + $0x8] sm:$0xff]
        %v293 = vld [vmem:[%s251 + $0x10] sm:$0xff]
        %v294 = vld [vmem:[%s251 + $0x18] sm:$0xff]
        %v295 = vld [vmem:[%s251 + $0x20] sm:$0xff]
        %v296 = vld [vmem:[%s251 + $0x28] sm:$0xff]
        %v297 = vld [vmem:[%s251 + $0x30] sm:$0xff]
        %v298 = vld [vmem:[%s251 + $0x38] sm:$0xff]
        %v299 = vld [vmem:[%s251 + $0x40] sm:$0xff]
        %v300 = vld [vmem:[%s289] sm:$0xff]
        %v301 = vld [vmem:[%s2] sm:$0xf]
        %v302 = vld [vmem:[%s2 + $0x4] sm:$0xf]
        %v303 = vld [vmem:[%s3] sm:$0xff]
        %v304 = vld [vmem:[%s3 + $0x8] sm:$0xff]
        %306 = vset.pattern.permute.xlu0 0
        %307 = vperm.xlu0 %306, %v303
        %v308 = vpop.permute.xlu0 %307
        %311 = vset.pattern.permute.xlu0 0
        %312 = vperm.xlu0 %311, %v304
        %v313 = vpop.permute.xlu0 %312
        %v317 = vunpack.c.l.b16 %v301
        %v318 = vunpack.c.l.b16 %v302
        %v319 = vpack.c.b16 %v318, %v317
        %v329 = vunpack.c.l.b16 %v291
        %v330 = vunpack.c.h.b16 %v291
        %v331 = vunpack.c.l.b16 %v292
        %v332 = vunpack.c.h.b16 %v292
        %v333 = vunpack.c.l.b16 %v293
        %v334 = vunpack.c.h.b16 %v293
        %v335 = vunpack.c.l.b16 %v294
        %v336 = vunpack.c.h.b16 %v294
        %v337 = vunpack.c.l.b16 %v295
        %v338 = vunpack.c.h.b16 %v295
        %v339 = vunpack.c.l.b16 %v296
        %v340 = vunpack.c.h.b16 %v296
        %v341 = vunpack.c.l.b16 %v297
        %v342 = vunpack.c.h.b16 %v297
        %v343 = vunpack.c.l.b16 %v298
        %v344 = vunpack.c.h.b16 %v298
        %v345 = vunpack.c.l.b16 %v299
        %v346 = vunpack.c.h.b16 %v299
        %v347 = vpack.c.b16 %v331, %v329
        %v348 = vpack.c.b16 %v332, %v330
        %v349 = vpack.c.b16 %v335, %v333
        %v350 = vpack.c.b16 %v336, %v334
        %v351 = vpack.c.b16 %v339, %v337
        %v352 = vpack.c.b16 %v340, %v338
        %v353 = vpack.c.b16 %v343, %v341
        %v354 = vpack.c.b16 %v344, %v342
        %v355 = vpack.c.b16 %v345, %v345
        %v356 = vpack.c.b16 %v346, %v346
        %vm365 = vcmask 588800
        %v367 = vsel %vm365, %v319, 0
        %vm369 = vcmask 1043456
        %v371 = vsel %vm369, %v355, 0
        %v374 = vsel %vm369, %v356, 0
        %376 = vmatprep.subr.bf16.mxu0 0
        %377 = vmatpush1.bf16.msra.mxu0 0
        %378 = vmatprep.subr.bf16.mxu0 0
        %379 = vmatpush1.bf16.msra.mxu0 0
        %380 = vmatprep.subr.bf16.mxu0 0
        %381 = vmatpush1.bf16.msra.mxu0 0
        %382 = vmatprep.subr.bf16.mxu0 %v374
        %383 = vmatpush1.bf16.msra.mxu0 %v371
        %384 = vmatprep.subr.bf16.mxu0 %v354
        %385 = vmatpush1.bf16.msra.mxu0 %v353
        %386 = vmatprep.subr.bf16.mxu0 %v352
        %387 = vmatpush1.bf16.msra.mxu0 %v351
        %388 = vmatprep.subr.bf16.mxu0 %v350
        %389 = vmatpush1.bf16.msra.mxu0 %v349
        %390 = vmatprep.subr.bf16.mxu0 %v348
        %391 = vmatpush1.bf16.msra.mxu0 %v347
        %392 = vmatprep.subr.bf16.mxu0 0
        %393 = vmatpush2.bf16.msra.mxu0 0
        %394 = vmatprep.subr.bf16.mxu0 0
        %395 = vmatpush2.bf16.msra.mxu0 0
        %396 = vmatprep.subr.bf16.mxu0 0
        %397 = vmatpush2.bf16.msra.mxu0 0
        %398 = vmatprep.subr.bf16.mxu0 0
        %399 = vmatpush2.bf16.msra.mxu0 0
        %400 = vmatprep.subr.bf16.mxu0 0
        %401 = vmatpush2.bf16.msra.mxu0 0
        %402 = vmatprep.subr.bf16.mxu0 0
        %403 = vmatpush2.bf16.msra.mxu0 0
        %404 = vmatprep.subr.bf16.mxu0 0
        %405 = vmatpush2.bf16.msra.mxu0 0
        %406 = vmatprep.subr.bf16.mxu0 0
        %407 = vmatpush2.bf16.msra.mxu0 0
        %408 = vmatprep.mubr.bf16.mxu0 0
        %409 = vmatmul.mubr.bf16.gmra.mxu0 %v367
        %v410 = vpop.f32.mrf.mxu0
        %v411 = vadd.f32 %v308, %v410
        %v412 = vpop.f32.mrf.mxu0
        %v413 = vadd.f32 %v308, %v412
        %v414 = vpop.f32.mrf.mxu0
        %v415 = vadd.f32 %v313, %v414
        %v416 = vpop.f32.mrf.mxu0
        %v417 = vadd.f32 %v313, %v416
        %418 = vdwg.mxu0
        %v419 = vld [vmem:[%s4] sm:$0x3]
        %v421 = vunpack.c.l.b16 %v300
        %v422 = vunpack.c.h.b16 %v300
        %v423 = vpack.c.b16 %v421, %v421
        %v424 = vpack.c.b16 %v422, %v422
        %vm425 = vcmask 64512
        %v427 = vsel %vm425, %v419, 0
        %v430 = vsel %vm369, %v423, 0
        %v433 = vsel %vm369, %v424, 0
        %435 = vmatprep.subr.bf16.mxu0 0
        %436 = vmatpush1.bf16.msra.mxu0 0
        %437 = vmatprep.subr.bf16.mxu0 0
        %438 = vmatpush1.bf16.msra.mxu0 0
        %439 = vmatprep.subr.bf16.mxu0 0
        %440 = vmatpush1.bf16.msra.mxu0 0
        %441 = vmatprep.subr.bf16.mxu0 0
        %442 = vmatpush1.bf16.msra.mxu0 0
        %443 = vmatprep.subr.bf16.mxu0 0
        %444 = vmatpush1.bf16.msra.mxu0 0
        %445 = vmatprep.subr.bf16.mxu0 0
        %446 = vmatpush1.bf16.msra.mxu0 0
        %447 = vmatprep.subr.bf16.mxu0 0
        %448 = vmatpush1.bf16.msra.mxu0 0
        %449 = vmatprep.subr.bf16.mxu0 %v433
        %450 = vmatpush1.bf16.msra.mxu0 %v430
        %451 = vmatprep.subr.bf16.mxu0 0
        %452 = vmatpush2.bf16.msra.mxu0 0
        %453 = vmatprep.subr.bf16.mxu0 0
        %454 = vmatpush2.bf16.msra.mxu0 0
        %455 = vmatprep.subr.bf16.mxu0 0
        %456 = vmatpush2.bf16.msra.mxu0 0
        %457 = vmatprep.subr.bf16.mxu0 0
        %458 = vmatpush2.bf16.msra.mxu0 0
        %459 = vmatprep.subr.bf16.mxu0 0
        %460 = vmatpush2.bf16.msra.mxu0 0
        %461 = vmatprep.subr.bf16.mxu0 0
        %462 = vmatpush2.bf16.msra.mxu0 0
        %463 = vmatprep.subr.bf16.mxu0 0
        %464 = vmatpush2.bf16.msra.mxu0 0
        %465 = vmatprep.subr.bf16.mxu0 0
        %466 = vmatpush2.bf16.msra.mxu0 0
        %467 = vmatprep.mubr.bf16.mxu0 0
        %468 = vmatmul.mubr.bf16.gmra.mxu0 %v427
        %v469 = vpop.f32.mrf.mxu0
        %v470 = vadd.f32 0.0, %v469
        %v471 = vpop.f32.mrf.mxu0
        %v472 = vadd.f32 0.0, %v471
        %v473 = vpop.f32.mrf.mxu0
        %v474 = vpop.f32.mrf.mxu0
        %475 = vdwg.mxu0
        %v476 = vld [vmem:[%s5] sm:$0xf]
        %v477 = vld [vmem:[%s5 + $0x4] sm:$0x3]
        %v478 = vpack.c.bf16 %v470, %v470
        %v479 = vpack.c.bf16 %v472, %v472
        %v482 = vunpack.c.l.b16 %v476
        %v483 = vunpack.c.l.b16 %v477
        %v484 = vpack.c.b16 %v483, %v482
        %vm485 = vcmask 31744
        %v487 = vsel %vm485, %v484, 0
        %vm489 = vcmask 1041408
        %v491 = vsel %vm489, %v478, 0
        %v494 = vsel %vm489, %v479, 0
        %496 = vmatprep.subr.bf16.mxu0 0
        %497 = vmatpush1.bf16.msra.mxu0 0
        %498 = vmatprep.subr.bf16.mxu0 0
        %499 = vmatpush1.bf16.msra.mxu0 0
        %500 = vmatprep.subr.bf16.mxu0 0
        %501 = vmatpush1.bf16.msra.mxu0 0
        %502 = vmatprep.subr.bf16.mxu0 0
        %503 = vmatpush1.bf16.msra.mxu0 0
        %504 = vmatprep.subr.bf16.mxu0 0
        %505 = vmatpush1.bf16.msra.mxu0 0
        %506 = vmatprep.subr.bf16.mxu0 0
        %507 = vmatpush1.bf16.msra.mxu0 0
        %508 = vmatprep.subr.bf16.mxu0 0
        %509 = vmatpush1.bf16.msra.mxu0 0
        %510 = vmatprep.subr.bf16.mxu0 %v494
        %511 = vmatpush1.bf16.msra.mxu0 %v491
        %512 = vmatprep.subr.bf16.mxu0 0
        %513 = vmatpush2.bf16.msra.mxu0 0
        %514 = vmatprep.subr.bf16.mxu0 0
        %515 = vmatpush2.bf16.msra.mxu0 0
        %516 = vmatprep.subr.bf16.mxu0 0
        %517 = vmatpush2.bf16.msra.mxu0 0
        %518 = vmatprep.subr.bf16.mxu0 0
        %519 = vmatpush2.bf16.msra.mxu0 0
        %520 = vmatprep.subr.bf16.mxu0 0
        %521 = vmatpush2.bf16.msra.mxu0 0
        %522 = vmatprep.subr.bf16.mxu0 0
        %523 = vmatpush2.bf16.msra.mxu0 0
        %524 = vmatprep.subr.bf16.mxu0 0
        %525 = vmatpush2.bf16.msra.mxu0 0
        %526 = vmatprep.subr.bf16.mxu0 0
        %527 = vmatpush2.bf16.msra.mxu0 0
        %528 = vmatprep.mubr.bf16.mxu0 0
        %529 = vmatmul.mubr.bf16.gmra.mxu0 %v487
        %v530 = vpop.f32.mrf.mxu0
        %v531 = vadd.f32 0.0, %v530
        %v532 = vpop.f32.mrf.mxu0
        %v533 = vadd.f32 0.0, %v532
        %v534 = vpop.f32.mrf.mxu0
        %v535 = vadd.f32 0.0, %v534
        %v536 = vpop.f32.mrf.mxu0
        %v537 = vadd.f32 0.0, %v536
        %538 = vdwg.mxu0
        %v541 = vrot.slane %v470, 4
        %v542 = vrot.slane %v472, 4
        %v545 = vsel %vm369, %v535, %v541
        %v546 = vsel %vm369, %v537, %v542
        %v547 = vadd.f32 %v411, %v413
        %548 = vadd.xlane.f32.xlu0 %v547
        %v549 = vpop.xlane.xlu0 %548
        %v550 = vadd.f32 %v415, %v417
        %551 = vadd.xlane.f32.xlu0 %v550
        %v552 = vpop.xlane.xlu0 %551
        %v553 = vrcp.pop 256.0
        %v554 = vmul.f32 %v549, %v553
        %v555 = vmul.f32 %v552, %v553
        %v556 = vadd.f32 %v531, %v533
        %557 = vadd.xlane.f32.xlu0 %v556
        %v558 = vpop.xlane.xlu0 %557
        %v559 = vadd.f32 %v545, %v546
        %560 = vadd.xlane.f32.xlu0 %v559
        %v561 = vpop.xlane.xlu0 %560
        %v562 = vmul.f32 %v558, %v553
        %v563 = vmul.f32 %v561, %v553
        %vm564 = vcmask 7168
        %v565 = vsel %vm564, %v554, -inf
        %v566 = vsel %vm564, %v555, -inf
        %v567 = vsel %vm564, %v562, -inf
        %v568 = vsel %vm564, %v563, -inf
        %v569 = vmax.f32 %v565, %v566
        %v570 = vmax.f32 %v567, %v568
        %v571 = vmax.f32 %v569, %v570
        %v572 = vrot.slane %v571, 4
        %v573 = vmax.f32 %v571, %v572
        %v574 = vrot.slane %v573, 2
        %v575 = vmax.f32 %v573, %v574
        %v576 = vrot.slane %v575, 1
        %v577 = vmax.f32 %v575, %v576
        %v578 = vsub.f32 %v554, %v577
        %v579 = vsub.f32 %v555, %v577
        %v580 = vsub.f32 %v562, %v577
        %v581 = vsub.f32 %v563, %v577
        %v582 = vmul.f32 %v578, 1.442695
        %v583 = vpow.pop %v582
        %v584 = vmul.f32 %v579, 1.442695
        %v585 = vpow.pop %v584
        %v586 = vmul.f32 %v580, 1.442695
        %v587 = vpow.pop %v586
        %v588 = vmul.f32 %v581, 1.442695
        %v589 = vpow.pop %v588
        %v590 = vsel %vm564, %v583, 0.0
        %v591 = vsel %vm564, %v585, 0.0
        %v592 = vadd.f32 %v590, %v591
        %v593 = vsel %vm564, %v587, 0.0
        %v594 = vadd.f32 %v592, %v593
        %v595 = vsel %vm564, %v589, 0.0
        %v596 = vadd.f32 %v594, %v595
        %v597 = vrot.slane %v596, 4
        %v598 = vadd.f32 %v596, %v597
        %v599 = vrot.slane %v598, 2
        %v600 = vadd.f32 %v598, %v599
        %v601 = vrot.slane %v600, 1
        %v602 = vadd.f32 %v600, %v601
        %v603 = vrcp.pop %v602
        %v604 = vmul.f32 %v583, %v603
        %v605 = vmul.f32 %v585, %v603
        %v606 = vmul.f32 %v587, %v603
        %v607 = vmul.f32 %v589, %v603
        %609 = vset.pattern.permute.xlu0 0
        %610 = vperm.xlu0 %609, %v604
        %v611 = vpop.permute.xlu0 %610
        %614 = vset.pattern.permute.xlu0 0
        %615 = vperm.xlu0 %614, %v605
        %v616 = vpop.permute.xlu0 %615
        %v618 = vmul.f32 %v411, %v611
        %v619 = vmul.f32 %v413, %v611
        %v620 = vmul.f32 %v415, %v616
        %v621 = vmul.f32 %v417, %v616
        %623 = vset.pattern.permute.xlu0 0
        %624 = vperm.xlu0 %623, %v606
        %v625 = vpop.permute.xlu0 %624
        %628 = vset.pattern.permute.xlu0 0
        %629 = vperm.xlu0 %628, %v607
        %v630 = vpop.permute.xlu0 %629
        %v632 = vmul.f32 %v531, %v625
        %v633 = vmul.f32 %v533, %v625
        %v634 = vmul.f32 %v545, %v630
        %v635 = vmul.f32 %v546, %v630
        %v636 = vadd.f32 %v618, %v632
        %v637 = vadd.f32 %v619, %v633
        %v638 = vadd.f32 %v620, %v634
        %v639 = vadd.f32 %v621, %v635
        %640 = vst [vmem:[%s284] sm:$0xff] %v636
        %641 = vst [vmem:[%s284 + $0x8] sm:$0xff] %v637
        %642 = vst [vmem:[%s284 + $0x10] sm:$0xff] %v638
        %643 = vst [vmem:[%s284 + $0x18] sm:$0xff] %v639
        %s644 = sand.u32 %s167, 1
        %s645 = scalar_lea.sflag [#allocation4], %s644
        %s646 = sand.u32 %s167, 1
        %s647 = smul.addr %s646, 32
        %s648 = scalar_lea.vmem [#allocation5], %s647
        // Predicated region
        $region49: #{tpu_custom_call.1} parent=43 // pred_check
          %p649 = pneg %p177
        $region50: #{tpu_custom_call.1} parent=43 // pred_check_branch
          %651 = sbr.rel (%p649) target = $region52
        $region51: #{tpu_custom_call.1} parent=43 // pred_region
          %s653 = ssub.s32 512, 512
          %654 = vsyncadd %s645, %s653
          %s655 = smul.addr %s23, 4
          %s656 = smul.addr %s655, 128
          %s657 = scalar_lea.hbm %s6, %s656
          %s658 = sshll.u32 %s648, 4
          %s659 = int_to_ptr.vmem [resolvable:$true] %s658
          %664 = dma.vmem_to_hbm [thread:$0]  %s659, 512, %s657, %s645, 256, 256, 16
        $region52: #{tpu_custom_call.1} parent=43 // pred_fallthru
          _
      $region44: #{tpu_custom_call.1} parent=5 // pred_fallthru
        _
      %p665 = scmp.le.s32.totalorder 2, %s18
      // Predicated region
      $region53: #{tpu_custom_call.1} parent=5 // pred_check
        %p666 = pneg %p665
      $region54: #{tpu_custom_call.1} parent=5 // pred_check_branch
        %668 = sbr.rel (%p666) target = $region56
      $region55: #{tpu_custom_call.1} parent=5 // pred_region
        %s669 = ssub.s32 %s18, 2
        // Predicated region
        $region57: #{tpu_custom_call.1} parent=55 // pred_check
          %p670 = pneg %p183
        $region58: #{tpu_custom_call.1} parent=55 // pred_check_branch
          %672 = sbr.rel (%p670) target = $region60
        $region59: #{tpu_custom_call.1} parent=55 // pred_region
          %s673 = sand.u32 %s168, 1
          %s674 = scalar_lea.sflag [#allocation4], %s673
          %s675 = sand.u32 %s168, 1
          %s676 = smul.addr %s675, 32
          %s677 = scalar_lea.vmem [#allocation5], %s676
          %678 = dma.done %s674, 512
        $region60: #{tpu_custom_call.1} parent=55 // pred_fallthru
          _
      $region56: #{tpu_custom_call.1} parent=5 // pred_fallthru
        _
    $region6: #{tpu_custom_call.1} parent=1 // loop_footer
      %s22 = sadd.s32 1, %s18
    $region7: #{tpu_custom_call.1} parent=1 // loop_footer_branch
      %17 = sbr.rel target = $region3
    $region8: #{tpu_custom_call.1} parent=1 // loop_exit
      _
    %679 = vsyncpa [#allocation3], 1
    %s680 = scalar_lea.sflag [#allocation3], 1
    %681 = vsyncpa %s680, 1
    %682 = vsyncpa [#allocation4], 1
    %s683 = scalar_lea.sflag [#allocation4], 1
    %684 = vsyncpa %s683, 1

</llo_original>
